<compile_context>
chip_gen: v6e
topology: v6e:2x2x1
jax: 0.10.0
libtpu: 0.0.40
codegen_flags: <defaults>
</compile_context>

<pallas_src>
import functools

import jax
import jax.numpy as jnp
from jax.experimental import pallas as pl
from jax.experimental.pallas import tpu as pltpu

_LANE = 128
_ROW_ALIGN = 16           # multiple of 8 (f32 sublanes) and 16 (bf16 packing)
_MAX_BLOCK_ROWS = 4096    # 4096 * 128 * 4B = 2 MiB per f32 plane per grid step
_MIN_SPLIT_ROWS = 1024    # above this, force an even >=2-step grid (v7x megacore)


def _round_up(n: int, m: int) -> int:
    return ((n + m - 1) // m) * m


def _cdiv(a: int, b: int) -> int:
    return -(-a // b)


# ---------------------------------------------------------------------------
# Kernels
# ---------------------------------------------------------------------------

def _aas_if_init_kernel(x_ref, out_ref, v_out_ref, *, aas, v_threshold):
    """First timestep: v starts at 0.5, rate_tracking == spike (no state reads)."""
    inv_aas = 1.0 / aas
    v = 0.5 + x_ref[...].astype(jnp.float32) * inv_aas      # charge on x / AAS
    spike = (v >= v_threshold).astype(jnp.float32)          # heaviside(v - vth)
    v_out_ref[...] = v - spike * v_threshold                 # soft reset
    s_scaled = spike * aas
    out_ref[0] = s_scaled                                     # spike * AAS
    out_ref[1] = s_scaled                                     # rate(=spike) * AAS


def _aas_if_step_kernel(x_ref, v_ref, prev_out_ref, out_ref, v_out_ref, *,
                        aas, v_threshold):
    """Later timesteps: the rate state is plane [1] of the previous fused
    output (already scaled by AAS), fetched directly via the BlockSpec."""
    inv_aas = 1.0 / aas
    v = v_ref[...] + x_ref[...].astype(jnp.float32) * inv_aas
    spike = (v >= v_threshold).astype(jnp.float32)
    v_out_ref[...] = v - spike * v_threshold
    s_scaled = spike * aas
    out_ref[0] = s_scaled
    # (rate + spike) * AAS accumulated in scaled units; exact for AAS values
    # with short mantissas (1.0, 1.5, 2.0, ...), otherwise within ~1 ulp of
    # torch's unscaled accumulation followed by *AAS.
    out_ref[1] = prev_out_ref[0] + s_scaled


# ---------------------------------------------------------------------------
# pallas_call wrappers
# ---------------------------------------------------------------------------

def _vmem_limit(block_rows: int) -> int:
    tile_bytes = block_rows * _LANE * 4
    # 6 live f32 planes per grid step (x, v_in, rate_in, 2-wide cat out, v_out),
    # double-buffered, plus headroom.  Cap at 48 MiB so v7x (64 MiB/TC) is safe.
    return min(12 * tile_bytes + (4 << 20), 48 << 20)


def _run_init(x2d, *, aas, v_threshold, block_rows):
    R, C = x2d.shape
    io_spec = pl.BlockSpec((block_rows, C), lambda i: (i, 0))
    cat_spec = pl.BlockSpec((2, block_rows, C), lambda i: (0, i, 0))
    kernel = functools.partial(_aas_if_init_kernel, aas=aas, v_threshold=v_threshold)
    return pl.pallas_call(
        kernel,
        out_shape=(jax.ShapeDtypeStruct((2, R, C), jnp.float32),   # cat * AAS
                   jax.ShapeDtypeStruct((R, C), jnp.float32)),     # new v
        grid_spec=pltpu.PrefetchScalarGridSpec(
            num_scalar_prefetch=0,
            grid=(R // block_rows,),
            in_specs=[io_spec],
            out_specs=[cat_spec, io_spec]),
        compiler_params=pltpu.CompilerParams(
            dimension_semantics=("parallel",),
            vmem_limit_bytes=_vmem_limit(block_rows)),
    )(x2d)


def _run_step(x2d, v2d, prev_out3d, *, aas, v_threshold, block_rows):
    R, C = x2d.shape
    io_spec = pl.BlockSpec((block_rows, C), lambda i: (i, 0))
    # Read only plane [1] (the scaled rate) of the previous fused output.
    rate_spec = pl.BlockSpec((1, block_rows, C), lambda i: (1, i, 0))
    cat_spec = pl.BlockSpec((2, block_rows, C), lambda i: (0, i, 0))
    kernel = functools.partial(_aas_if_step_kernel, aas=aas, v_threshold=v_threshold)
    return pl.pallas_call(
        kernel,
        out_shape=(jax.ShapeDtypeStruct((2, R, C), jnp.float32),
                   jax.ShapeDtypeStruct((R, C), jnp.float32)),
        grid_spec=pltpu.PrefetchScalarGridSpec(
            num_scalar_prefetch=0,
            grid=(R // block_rows,),
            in_specs=[io_spec, io_spec, rate_spec],
            out_specs=[cat_spec, io_spec]),
        compiler_params=pltpu.CompilerParams(
            dimension_semantics=("parallel",),
            vmem_limit_bytes=_vmem_limit(block_rows)),
    )(x2d, v2d, prev_out3d)


# ---------------------------------------------------------------------------
# Host-side wrapper
# ---------------------------------------------------------------------------

def _choose_layout(n: int):
    """Pick (block_rows, padded_rows) for n flattened elements."""
    rows = _round_up(_cdiv(n, _LANE), _ROW_ALIGN)
    if rows <= _MIN_SPLIT_ROWS:
        return rows, rows                                  # single grid step
    n_steps = max(2, _cdiv(rows, _MAX_BLOCK_ROWS))
    if n_steps % 2:
        n_steps += 1                   # even step count -> balanced on v7x's 2 TCs
    block_rows = _round_up(_cdiv(rows, n_steps), _ROW_ALIGN)   # <= _MAX_BLOCK_ROWS
    return block_rows, block_rows * n_steps


def _flatten_pad(a, r_pad):
    flat = a.reshape(-1)
    pad = r_pad * _LANE - flat.shape[0]
    if pad:
        flat = jnp.pad(flat, (0, pad))
    return flat.reshape(r_pad, _LANE)


def aas_neuron_forward(x, state=None, *, aas=1.0, v_threshold=1.0, init=False):
    """One forward step of AASNeuron.

    x:     (B, C, H, W), float32 or bfloat16.
    state: opaque padded-layout carry returned by the previous call, or None
           (equivalent to init=True).
    Returns (out, state) with out of shape (2*B, C, H, W) ==
    cat([spike, rate_tracking], dim=0) * AAS.

    Padding rows in the carried state never influence real rows and are sliced
    off the returned output, so spurious pad-row spikes (possible when
    v_threshold <= 0.5) are harmless.
    """
    B, Ch, H, W = x.shape
    n = B * Ch * H * W
    if x.dtype not in (jnp.float32, jnp.bfloat16):
        x = x.astype(jnp.float32)
    block_rows, r_pad = _choose_layout(n)
    x2d = _flatten_pad(x, r_pad)

    if init or state is None:
        out3d, v2d = _run_init(x2d, aas=aas, v_threshold=v_threshold,
                               block_rows=block_rows)
    else:
        v2d, prev_out3d = state
        assert v2d.shape == (r_pad, _LANE) and prev_out3d.shape == (2, r_pad, _LANE), \
            "carried state does not match x's layout; pass init=True after a shape change"
        out3d, v2d = _run_step(x2d, v2d, prev_out3d, aas=aas,
                               v_threshold=v_threshold, block_rows=block_rows)

    # cat([spike, rate], dim=0) * AAS: free contiguous reshape when n is
    # 128-aligned, otherwise one contiguous slice (no per-plane slice+concat).
    out = out3d.reshape(2, -1)[:, :n].reshape(2 * B, Ch, H, W)
    return out, (v2d, out3d)


# ---------------------------------------------------------------------------
# Pure-JAX reference of the PyTorch semantics (for verification)
# ---------------------------------------------------------------------------

def _reference_step(x, v, rate, aas, vth):
    xs = x / aas
    v = v + xs
    spike = (v >= vth).astype(jnp.float32)
    v = v - spike * vth
    rate = rate + spike
    out = jnp.concatenate([spike, rate], axis=0) * aas
    return out, v, rate


if __name__ == "__main__":
    key = jax.random.PRNGKey(0)
    B, C, H, W = 2, 4, 16, 16
    AAS, VTH = 1.5, 1.0

    xs = [jax.random.normal(jax.random.fold_in(key, t), (B, C, H, W),
                            dtype=jnp.float32) for t in range(3)]

    # --- multi-timestep, 128-aligned shape --------------------------------
    state = None
    rv = jnp.full((B, C, H, W), 0.5, jnp.float32)
    rr = jnp.zeros((B, C, H, W), jnp.float32)
    out = None
    for t, x in enumerate(xs):
        out, state = aas_neuron_forward(x, state, aas=AAS, v_threshold=VTH,
                                        init=(t == 0))
        ro, rv, rr = _reference_step(x, rv, rr, AAS, VTH)
        assert out.shape == (2 * B, C, H, W)
        assert jnp.allclose(out, ro, atol=1e-6), f"step {t} output mismatch"
    n = B * C * H * W
    v_carried = state[0].reshape(-1)[:n].reshape(B, C, H, W)
    assert jnp.allclose(v_carried, rv, atol=1e-6), "membrane potential mismatch"
    jax.block_until_ready((out, state))

    # --- non-128-aligned shape: padding + padded-state carry across steps --
    # vth=0.25 (< init v of 0.5) also exercises spiking pad rows, which must
    # never leak into the sliced output.
    for vth in (1.0, 0.25):
        xp1 = jax.random.normal(jax.random.fold_in(key, 10), (1, 3, 5, 7),
                                dtype=jnp.float32)
        xp2 = jax.random.normal(jax.random.fold_in(key, 11), (1, 3, 5, 7),
                                dtype=jnp.float32)
        op1, st = aas_neuron_forward(xp1, aas=AAS, v_threshold=vth, init=True)
        op2, st = aas_neuron_forward(xp2, st, aas=AAS, v_threshold=vth)
        pv = jnp.full(xp1.shape, 0.5, jnp.float32)
        pr = jnp.zeros(xp1.shape, jnp.float32)
        rp1, pv, pr = _reference_step(xp1, pv, pr, AAS, vth)
        rp2, pv, pr = _reference_step(xp2, pv, pr, AAS, vth)
        assert op1.shape == (2 * 1, 3, 5, 7)
        assert jnp.allclose(op1, rp1, atol=1e-6)
        assert jnp.allclose(op2, rp2, atol=1e-6)
        jax.block_until_ready((op1, op2))

    # --- bf16 activations consumed directly by the kernel ------------------
    xb = xs[0].astype(jnp.bfloat16)
    ob, _ = aas_neuron_forward(xb, aas=AAS, v_threshold=VTH, init=True)
    vb = jnp.full((B, C, H, W), 0.5, jnp.float32)
    rb = jnp.zeros((B, C, H, W), jnp.float32)
    rob, _, _ = _reference_step(xb.astype(jnp.float32), vb, rb, AAS, VTH)
    assert ob.dtype == jnp.float32
    assert jnp.allclose(ob, rob, atol=1e-6)
    jax.block_until_ready(ob)

    print("KERNEL_OK")
</pallas_src>

<mosaic_0001>
module attributes {stable_mosaic.version = 11 : i64} {
  func.func @_aas_if_init_kernel(%arg0: i32, %arg1: memref<16x128xf32, #tpu.memory_space<vmem>>, %arg2: memref<2x16x128xf32, #tpu.memory_space<vmem>>, %arg3: memref<16x128xf32, #tpu.memory_space<vmem>>) attributes {dimension_semantics = [#tpu.dimension_semantics<parallel>], iteration_bounds = array<i64: 1>, scalar_prefetch = 0 : i64, scratch_operands = 0 : i64, tpu.core_type = #tpu.core_type<tc>, window_params = [{transform_indices = @transform_0, window_bounds = array<i64: 16, 128>}, {transform_indices = @transform_1, window_bounds = array<i64: 2, 16, 128>}, {transform_indices = @transform_2, window_bounds = array<i64: 16, 128>}]} {
    %c0 = arith.constant 0 : index
    %c0_0 = arith.constant 0 : index
    %0 = vector.load %arg1[%c0, %c0_0] : memref<16x128xf32, #tpu.memory_space<vmem>>, vector<16x128xf32>
    %cst = arith.constant 0.666666686 : f32
    %1 = vector.broadcast %cst : f32 to vector<16x128xf32>
    %2 = arith.mulf %0, %1 : vector<16x128xf32>
    %cst_1 = arith.constant 5.000000e-01 : f32
    %3 = vector.broadcast %cst_1 : f32 to vector<16x128xf32>
    %4 = arith.addf %3, %2 : vector<16x128xf32>
    %cst_2 = arith.constant 1.000000e+00 : f32
    %5 = vector.broadcast %cst_2 : f32 to vector<16x128xf32>
    %6 = arith.cmpf oge, %4, %5 : vector<16x128xf32>
    %7 = arith.extui %6 : vector<16x128xi1> to vector<16x128xi32>
    %8 = arith.sitofp %7 : vector<16x128xi32> to vector<16x128xf32>
    %cst_3 = arith.constant 1.000000e+00 : f32
    %9 = vector.broadcast %cst_3 : f32 to vector<16x128xf32>
    %10 = arith.mulf %8, %9 : vector<16x128xf32>
    %11 = arith.subf %4, %10 : vector<16x128xf32>
    %c0_4 = arith.constant 0 : index
    %c0_5 = arith.constant 0 : index
    %12 = vector.load %arg3[%c0_4, %c0_5] : memref<16x128xf32, #tpu.memory_space<vmem>>, vector<16x128xf32>
    tpu.vector_store %arg3[%c0_4, %c0_5], %11 {strides = array<i32>} : memref<16x128xf32, #tpu.memory_space<vmem>>, vector<16x128xf32>,
    %cst_6 = arith.constant 1.500000e+00 : f32
    %13 = vector.broadcast %cst_6 : f32 to vector<16x128xf32>
    %14 = arith.mulf %8, %13 : vector<16x128xf32>
    %c0_7 = arith.constant 0 : index
    %c0_8 = arith.constant 0 : index
    %c0_9 = arith.constant 0 : index
    %15 = vector.load %arg2[%c0_7, %c0_8, %c0_9] : memref<2x16x128xf32, #tpu.memory_space<vmem>>, vector<1x16x128xf32>
    %16 = vector.shape_cast %15 : vector<1x16x128xf32> to vector<16x128xf32>
    %17 = vector.shape_cast %14 : vector<16x128xf32> to vector<1x16x128xf32>
    tpu.vector_store %arg2[%c0_7, %c0_8, %c0_9], %17 {strides = array<i32>} : memref<2x16x128xf32, #tpu.memory_space<vmem>>, vector<1x16x128xf32>,
    %c1 = arith.constant 1 : index
    %c0_10 = arith.constant 0 : index
    %c0_11 = arith.constant 0 : index
    %18 = vector.load %arg2[%c1, %c0_10, %c0_11] : memref<2x16x128xf32, #tpu.memory_space<vmem>>, vector<1x16x128xf32>
    %19 = vector.shape_cast %18 : vector<1x16x128xf32> to vector<16x128xf32>
    %20 = vector.shape_cast %14 : vector<16x128xf32> to vector<1x16x128xf32>
    tpu.vector_store %arg2[%c1, %c0_10, %c0_11], %20 {strides = array<i32>} : memref<2x16x128xf32, #tpu.memory_space<vmem>>, vector<1x16x128xf32>,
    return
  }
  func.func @transform_0(%arg0: i32) -> (i32, i32) {
    %c0_i32 = arith.constant 0 : i32
    %c0_i32_0 = arith.constant 0 : i32
    return %arg0, %c0_i32 : i32, i32
  }
  func.func @transform_1(%arg0: i32) -> (i32, i32, i32) {
    %c0_i32 = arith.constant 0 : i32
    %c0_i32_0 = arith.constant 0 : i32
    %c0_i32_1 = arith.constant 0 : i32
    return %c0_i32, %arg0, %c0_i32_0 : i32, i32, i32
  }
  func.func @transform_2(%arg0: i32) -> (i32, i32) {
    %c0_i32 = arith.constant 0 : i32
    %c0_i32_0 = arith.constant 0 : i32
    return %arg0, %c0_i32 : i32, i32
  }
}

</mosaic_0001>

<llo_original>
// kernel: tpu_custom_call.1
$region0: #{tpu_custom_call.1}
  #allocation0 [shape = 'u32[]', space=smem, size = 0x4, offset = 0x4, fixed_abs, tag = 'smem constant byte address 0x4 - core index']
  #allocation1 [shape = 'u32[144,128]{1,0:T(1,128)}', space=vmem, size = 0x12000, scoped, tag = 'internal scratch']
  %s0 = inlined_call_operand.hbm [shape: f32[16,128], index: 0, kind: input, shape index: {}]
  %s1 = inlined_call_operand.hbm [shape: f32[2,16,128], index: 1, kind: output, shape index: {0}]
  %s2 = inlined_call_operand.hbm [shape: f32[16,128], index: 2, kind: output, shape index: {1}]
  %3 = xla_tuple %s1, %s2
  %s4 = sld [smem:[#allocation0]]
  $region26: #{tpu_custom_call.1} parent=0
    _
  %s6 = ssub.s32 1, %s4
  %s7 = scalar_select 0, %s6, %s4
  $region1: #{tpu_custom_call.1} parent=0
    #allocation2 [shape = 'u8[8192]{0}', space=vmem, size = 0x2000, scoped, tag = 'input window, operand 0, single buffered']
    #allocation3 [shape = 's32[1]{0}', space=sflag, size = 0x4, scoped, tag = 'scoped memory for tpu_custom_call.1']
    #allocation4 [shape = 's32[1]{0}', space=sflag, size = 0x4, scoped, tag = 'scoped memory for tpu_custom_call.1']
    #allocation5 [shape = 'u8[16384]{0}', space=vmem, size = 0x4000, scoped, tag = 'output window, operand 0, single buffered']
    #allocation6 [shape = 'u8[8192]{0}', space=vmem, size = 0x2000, scoped, tag = 'output window, operand 1, single buffered']
    #allocation7 [shape = 's32[1]{0}', space=sflag, size = 0x4, scoped, tag = 'scoped memory for tpu_custom_call.1']
    %8 = vsyncpa [#allocation3], 0
    %9 = vsyncpa [#allocation4], 0
    %10 = vsyncpa [#allocation7], 0
    // Predicated region
    $region2: #{tpu_custom_call.1} parent=1 // pred_check
      _
    $region3: #{tpu_custom_call.1} parent=1 // pred_check_branch
      %12 = sbr.rel (0) target = $region5
    $region4: #{tpu_custom_call.1} parent=1 // pred_region
      %s14 = ssub.s32 256, 256
      %15 = vsyncadd [#allocation3], %s14
      %s16 = sshll.u32 [#allocation2], 4
      %s17 = int_to_ptr.vmem [resolvable:$true] %s16
      %22 = dma.hbm_to_vmem [thread:$0]  %s0, 256, %s17, [#allocation3], 128, 128, 8
    $region5: #{tpu_custom_call.1} parent=1 // pred_fallthru
      _
    // Predicated region
    $region6: #{tpu_custom_call.1} parent=1 // pred_check
      _
    $region7: #{tpu_custom_call.1} parent=1 // pred_check_branch
      %24 = sbr.rel (0) target = $region9
    $region8: #{tpu_custom_call.1} parent=1 // pred_region
      %25 = dma.done [#allocation3], 256
    $region9: #{tpu_custom_call.1} parent=1 // pred_fallthru
      _
    %v26 = vld [vmem:[#allocation2] sm:$0xff]
    %v27 = vld [vmem:[#allocation2 + $0x8] sm:$0xff]
    %v28 = vmul.f32 %v26, 0.6666667
    %v29 = vmul.f32 %v27, 0.6666667
    %v30 = vadd.f32 %v28, 0.5
    %v31 = vadd.f32 %v29, 0.5
    %vm32 = vcmp.ge.f32.partialorder %v30, 1.0
    %vm33 = vcmp.ge.f32.partialorder %v31, 1.0
    %v34 = vsel %vm32, 1, 0
    %v35 = vsel %vm33, 1, 0
    %v36 = vcvt.s32.f32 %v34
    %v37 = vcvt.s32.f32 %v35
    %v38 = vsub.f32 %v30, %v36
    %v39 = vsub.f32 %v31, %v37
    %40 = vst [vmem:[#allocation6] sm:$0xff] %v38
    %41 = vst [vmem:[#allocation6 + $0x8] sm:$0xff] %v39
    %v42 = vmul.f32 %v36, 1.5
    %v43 = vmul.f32 %v37, 1.5
    %44 = vst [vmem:[#allocation5] sm:$0xff] %v42
    %45 = vst [vmem:[#allocation5 + $0x8] sm:$0xff] %v43
    %s46 = scalar_lea.vmem [#allocation5], 16
    %47 = vst [vmem:[%s46] sm:$0xff] %v42
    %48 = vst [vmem:[%s46 + $0x8] sm:$0xff] %v43
    // Predicated region
    $region10: #{tpu_custom_call.1} parent=1 // pred_check
      _
    $region11: #{tpu_custom_call.1} parent=1 // pred_check_branch
      %50 = sbr.rel (0) target = $region13
    $region12: #{tpu_custom_call.1} parent=1 // pred_region
      %s52 = ssub.s32 512, 512
      %53 = vsyncadd [#allocation4], %s52
      %s54 = sshll.u32 [#allocation5], 4
      %s55 = int_to_ptr.vmem [resolvable:$true] %s54
      %60 = dma.vmem_to_hbm [thread:$0]  %s55, 512, %s1, [#allocation4], 128, 128, 8
    $region13: #{tpu_custom_call.1} parent=1 // pred_fallthru
      _
    // Predicated region
    $region14: #{tpu_custom_call.1} parent=1 // pred_check
      _
    $region15: #{tpu_custom_call.1} parent=1 // pred_check_branch
      %62 = sbr.rel (0) target = $region17
    $region16: #{tpu_custom_call.1} parent=1 // pred_region
      %s64 = ssub.s32 256, 256
      %65 = vsyncadd [#allocation7], %s64
      %s66 = sshll.u32 [#allocation6], 4
      %s67 = int_to_ptr.vmem [resolvable:$true] %s66
      %72 = dma.vmem_to_hbm [thread:$0]  %s67, 256, %s2, [#allocation7], 128, 128, 8
    $region17: #{tpu_custom_call.1} parent=1 // pred_fallthru
      _
    // Predicated region
    $region18: #{tpu_custom_call.1} parent=1 // pred_check
      _
    $region19: #{tpu_custom_call.1} parent=1 // pred_check_branch
      %74 = sbr.rel (0) target = $region21
    $region20: #{tpu_custom_call.1} parent=1 // pred_region
      %75 = dma.done [#allocation4], 512
    $region21: #{tpu_custom_call.1} parent=1 // pred_fallthru
      _
    // Predicated region
    $region22: #{tpu_custom_call.1} parent=1 // pred_check
      _
    $region23: #{tpu_custom_call.1} parent=1 // pred_check_branch
      %77 = sbr.rel (0) target = $region25
    $region24: #{tpu_custom_call.1} parent=1 // pred_region
      %78 = dma.done [#allocation7], 256
    $region25: #{tpu_custom_call.1} parent=1 // pred_fallthru
      _
    %79 = vsyncpa [#allocation3], 1
    %80 = vsyncpa [#allocation4], 1
    %81 = vsyncpa [#allocation7], 1

</llo_original>
